<compile_context>
chip_gen: v5e
topology: v5e:2x2
jax: 0.10.0
libtpu: 0.0.40
codegen_flags: <defaults>
</compile_context>

<pallas_src>
import jax
import jax.numpy as jnp
from jax.experimental import pallas as pl
from jax.experimental.pallas import tpu as pltpu


def _clusterer_kernel(z_ref, ct_ref, csq_ref, nhis_ref, out_ref):
    z = z_ref[...]                # [TB, D]  streamed batch tile (bf16 or f32)
    ct = ct_ref[...]              # [D, K]   centroids^T, VMEM-resident
    c_sq = csq_ref[...]           # [1, K]   ||c||^2 (f32), VMEM-resident
    nhis = nhis_ref[...]          # [1, K]   -0.5 / sigma (f32), VMEM-resident

    # Cross term on the MXU with f32 accumulation (bf16 inputs are native).
    zc = jnp.dot(z, ct, preferred_element_type=jnp.float32)      # [TB, K]

    # ||z||^2 in f32 (VPU mul + XLU lane reduce).
    z32 = z.astype(jnp.float32)
    z_sq = jnp.sum(z32 * z32, axis=-1, keepdims=True)            # [TB, 1]

    # logits = -0.5 * ||z - c||^2 / sigma
    dist_sq = z_sq - 2.0 * zc + c_sq                              # [TB, K]
    logits = dist_sq * nhis                                       # [TB, K]

    # Softmax over clusters (lane axis).  exp -> EUP, max/sum -> XLU,
    # divide -> approximate EUP reciprocal (free slot).
    m = jnp.max(logits, axis=-1, keepdims=True)
    e = jnp.exp(logits - m)
    denom = jnp.sum(e, axis=-1, keepdims=True)
    out_ref[...] = (e * pl.reciprocal(denom, approx=True)).astype(out_ref.dtype)


def parametric_clusterer_forward(z, centroids, log_sigma, *,
                                 min_sigma=0.0, max_sigma=20.0,
                                 initialized=True, tile_b=2048):
    """z: [B, D]; centroids: [K, D]; log_sigma: [K] -> membership scores [B, K].

    Pass z (and centroids) in bf16 to halve the dominant HBM stream; f32 inputs
    also work (same kernel, multi-pass MXU).
    """
    B, D = z.shape
    K = centroids.shape[0]

    if not initialized:
        # Un-initialized module returns uniform memberships (no kernel needed).
        return jnp.full((B, K), 1.0 / K, dtype=jnp.float32)

    # Tiny per-call precomputes (O(K*D)), kept VMEM-resident across all tiles.
    ct = centroids.T.astype(z.dtype)                              # [D, K] streamed dtype
    ct32 = ct.astype(jnp.float32)
    c_sq = jnp.sum(ct32 * ct32, axis=0, keepdims=True)            # [1, K] f32
    sigma = jnp.clip(jnp.exp(log_sigma.astype(jnp.float32)),
                     float(min_sigma), float(max_sigma))          # [K]
    nhis = (-0.5 / sigma).reshape(1, K)                           # [1, K] f32

    # Batch tile: large (amortize per-step overhead), sublane-aligned, and
    # capped so the grid has >= 2 steps when possible (keeps both v7x
    # TensorCores busy; no-op on v5e/v6e).  Boundary block handled by Pallas.
    tb = min(int(tile_b), -(-B // 2) + (-(-B // 2) * -1) % 8 if False else ((-(-B // 2) + 7) // 8) * 8)
    if tb >= B:
        tb = B                        # single block == full batch (any B allowed)
    else:
        tb = max(8, (tb // 8) * 8)    # tiled path: multiple of 8 sublanes

    out = pl.pallas_call(
        _clusterer_kernel,
        out_shape=jax.ShapeDtypeStruct((B, K), jnp.float32),
        grid=(pl.cdiv(B, tb),),
        in_specs=[
            pl.BlockSpec((tb, D), lambda i: (i, 0)),   # z: streamed per batch tile
            pl.BlockSpec((D, K), lambda i: (0, 0)),    # centroids^T: VMEM-resident
            pl.BlockSpec((1, K), lambda i: (0, 0)),    # ||c||^2: VMEM-resident
            pl.BlockSpec((1, K), lambda i: (0, 0)),    # -0.5/sigma: VMEM-resident
        ],
        out_specs=pl.BlockSpec((tb, K), lambda i: (i, 0)),
        compiler_params=pltpu.CompilerParams(
            dimension_semantics=("parallel",),
        ),
    )(z, ct, c_sq, nhis)
    return out


def _reference(z, centroids, log_sigma, min_sigma=0.0, max_sigma=20.0):
    """Pure-JAX reference mirroring the PyTorch forward exactly (f32 math)."""
    zr = z.astype(jnp.float32)
    cr = centroids.astype(jnp.float32)
    sigma = jnp.clip(jnp.exp(log_sigma.astype(jnp.float32)), min_sigma, max_sigma)
    dist_sq = 0.5 * (zr[:, None, :] - cr[None, :, :]) ** 2 / sigma[None, :, None]
    return jax.nn.softmax(-jnp.sum(dist_sq, axis=-1), axis=1)


if __name__ == "__main__":
    B, D, K = 64, 32, 16   # small shapes consistent with the module

    key = jax.random.PRNGKey(0)
    kz, kc, ks, kz2 = jax.random.split(key, 4)
    z32 = jax.random.normal(kz, (B, D), jnp.float32)
    c32 = jax.random.normal(kc, (K, D), jnp.float32)
    log_sigma = 0.1 * jax.random.normal(ks, (K,), jnp.float32)

    # --- bf16-streamed path (recommended) ---------------------------------
    z_bf16 = z32.astype(jnp.bfloat16)
    c_bf16 = c32.astype(jnp.bfloat16)
    out = parametric_clusterer_forward(z_bf16, c_bf16, log_sigma)
    out = jax.block_until_ready(out)

    # Compare against the direct (z-c)^2 reference on the same (bf16-quantized)
    # inputs; tolerance covers the expanded-form cancellation and the
    # approximate EUP reciprocal in the softmax.
    ref = _reference(z_bf16, c_bf16, log_sigma)
    assert out.shape == (B, K)
    assert jnp.allclose(jnp.sum(out, axis=1), 1.0, atol=5e-3)
    assert jnp.allclose(out, ref, atol=5e-3), float(jnp.max(jnp.abs(out - ref)))

    # --- f32 path with a batch that is NOT a multiple of the tile ----------
    B2 = 37
    z37 = jax.random.normal(kz2, (B2, D), jnp.float32)
    out37 = jax.block_until_ready(
        parametric_clusterer_forward(z37, c32, log_sigma))
    ref37 = _reference(z37, c32, log_sigma)
    assert out37.shape == (B2, K)
    assert jnp.allclose(out37, ref37, atol=5e-3), float(jnp.max(jnp.abs(out37 - ref37)))

    # --- un-initialized path: uniform memberships (wrapper-only) -----------
    out_u = parametric_clusterer_forward(z_bf16, c_bf16, log_sigma, initialized=False)
    assert jnp.allclose(out_u, 1.0 / K, atol=1e-7)

    print("KERNEL_OK")
</pallas_src>

<mosaic_0001>
module attributes {stable_mosaic.version = 11 : i64} {
  func.func @_clusterer_kernel(%arg0: i32, %arg1: memref<32x32xbf16, #tpu.memory_space<vmem>>, %arg2: memref<32x16xbf16, #tpu.memory_space<vmem>>, %arg3: memref<1x16xf32, #tpu.memory_space<vmem>>, %arg4: memref<1x16xf32, #tpu.memory_space<vmem>>, %arg5: memref<32x16xf32, #tpu.memory_space<vmem>>) attributes {dimension_semantics = [#tpu.dimension_semantics<parallel>], iteration_bounds = array<i64: 2>, scalar_prefetch = 0 : i64, scratch_operands = 0 : i64, tpu.core_type = #tpu.core_type<tc>, window_params = [{transform_indices = @transform_0, window_bounds = array<i64: 32, 32>}, {pipeline_mode = #tpu.pipeline_mode<synchronous>, transform_indices = @transform_1, window_bounds = array<i64: 32, 16>}, {pipeline_mode = #tpu.pipeline_mode<synchronous>, transform_indices = @transform_2, window_bounds = array<i64: 1, 16>}, {pipeline_mode = #tpu.pipeline_mode<synchronous>, transform_indices = @transform_3, window_bounds = array<i64: 1, 16>}, {transform_indices = @transform_4, window_bounds = array<i64: 32, 16>}]} {
    %c0 = arith.constant 0 : index
    %c0_0 = arith.constant 0 : index
    %0 = vector.load %arg1[%c0, %c0_0] : memref<32x32xbf16, #tpu.memory_space<vmem>>, vector<32x32xbf16>
    %c0_1 = arith.constant 0 : index
    %c0_2 = arith.constant 0 : index
    %1 = vector.load %arg2[%c0_1, %c0_2] : memref<32x16xbf16, #tpu.memory_space<vmem>>, vector<32x16xbf16>
    %c0_3 = arith.constant 0 : index
    %c0_4 = arith.constant 0 : index
    %2 = vector.load %arg3[%c0_3, %c0_4] : memref<1x16xf32, #tpu.memory_space<vmem>>, vector<1x16xf32>
    %c0_5 = arith.constant 0 : index
    %c0_6 = arith.constant 0 : index
    %3 = vector.load %arg4[%c0_5, %c0_6] : memref<1x16xf32, #tpu.memory_space<vmem>>, vector<1x16xf32>
    %cst = arith.constant dense<0.000000e+00> : vector<32x16xf32>
    %4 = tpu.matmul %0, %1, %cst {dimension_numbers = #tpu.dot_dimension_numbers<[1], [0], [0], [1], [0, 0, 1, 1], [], []>} : vector<32x32xbf16>, vector<32x16xbf16>, vector<32x16xf32> -> vector<32x16xf32>
    %5 = arith.extf %0 : vector<32x32xbf16> to vector<32x32xf32>
    %6 = arith.mulf %5, %5 : vector<32x32xf32>
    %cst_7 = arith.constant dense<0.000000e+00> : vector<32xf32>
    %7 = vector.multi_reduction <add>, %6, %cst_7 [1] : vector<32x32xf32> to vector<32xf32>
    %8 = vector.shape_cast %7 : vector<32xf32> to vector<32x1xf32>
    %cst_8 = arith.constant 2.000000e+00 : f32
    %9 = vector.broadcast %cst_8 : f32 to vector<32x16xf32>
    %10 = arith.mulf %9, %4 : vector<32x16xf32>
    %11 = vector.broadcast %8 : vector<32x1xf32> to vector<32x16xf32>
    %12 = arith.subf %11, %10 : vector<32x16xf32>
    %13 = vector.broadcast %2 : vector<1x16xf32> to vector<32x16xf32>
    %14 = arith.addf %12, %13 : vector<32x16xf32>
    %15 = vector.broadcast %3 : vector<1x16xf32> to vector<32x16xf32>
    %16 = arith.mulf %14, %15 : vector<32x16xf32>
    %cst_9 = arith.constant dense<0xFF800000> : vector<32xf32>
    %17 = vector.multi_reduction <maximumf>, %16, %cst_9 [1] : vector<32x16xf32> to vector<32xf32>
    %18 = vector.shape_cast %17 : vector<32xf32> to vector<32x1xf32>
    %19 = vector.broadcast %18 : vector<32x1xf32> to vector<32x16xf32>
    %20 = arith.subf %16, %19 : vector<32x16xf32>
    %21 = math.exp %20 : vector<32x16xf32>
    %cst_10 = arith.constant dense<0.000000e+00> : vector<32xf32>
    %22 = vector.multi_reduction <add>, %21, %cst_10 [1] : vector<32x16xf32> to vector<32xf32>
    %23 = vector.shape_cast %22 : vector<32xf32> to vector<32x1xf32>
    %24 = tpu.reciprocal %23 {approx = true} : vector<32x1xf32> -> vector<32x1xf32>
    %25 = vector.broadcast %24 : vector<32x1xf32> to vector<32x16xf32>
    %26 = arith.mulf %21, %25 : vector<32x16xf32>
    %c0_11 = arith.constant 0 : index
    %c0_12 = arith.constant 0 : index
    %27 = vector.load %arg5[%c0_11, %c0_12] : memref<32x16xf32, #tpu.memory_space<vmem>>, vector<32x16xf32>
    tpu.vector_store %arg5[%c0_11, %c0_12], %26 {strides = array<i32>} : memref<32x16xf32, #tpu.memory_space<vmem>>, vector<32x16xf32>,
    return
  }
  func.func @transform_0(%arg0: i32) -> (i32, i32) {
    %c0_i32 = arith.constant 0 : i32
    %c0_i32_0 = arith.constant 0 : i32
    return %arg0, %c0_i32 : i32, i32
  }
  func.func @transform_1(%arg0: i32) -> (i32, i32) {
    %c0_i32 = arith.constant 0 : i32
    %c0_i32_0 = arith.constant 0 : i32
    %c0_i32_1 = arith.constant 0 : i32
    return %c0_i32, %c0_i32_0 : i32, i32
  }
  func.func @transform_2(%arg0: i32) -> (i32, i32) {
    %c0_i32 = arith.constant 0 : i32
    %c0_i32_0 = arith.constant 0 : i32
    %c0_i32_1 = arith.constant 0 : i32
    return %c0_i32, %c0_i32_0 : i32, i32
  }
  func.func @transform_3(%arg0: i32) -> (i32, i32) {
    %c0_i32 = arith.constant 0 : i32
    %c0_i32_0 = arith.constant 0 : i32
    %c0_i32_1 = arith.constant 0 : i32
    return %c0_i32, %c0_i32_0 : i32, i32
  }
  func.func @transform_4(%arg0: i32) -> (i32, i32) {
    %c0_i32 = arith.constant 0 : i32
    %c0_i32_0 = arith.constant 0 : i32
    return %arg0, %c0_i32 : i32, i32
  }
}

</mosaic_0001>

<llo_original>
// kernel: tpu_custom_call.1
$region0: #{tpu_custom_call.1}
  #allocation0 [shape = 'u32[]', space=smem, size = 0x4, offset = 0x4, fixed_abs, tag = 'smem constant byte address 0x4 - core index']
  #allocation1 [shape = 'u32[72,128]{1,0:T(1,128)}', space=vmem, size = 0x9000, scoped, tag = 'internal scratch']
  %s0 = inlined_call_operand.vmem [shape: bf16[64,32], index: 0, kind: input, shape index: {}]
  %s1 = inlined_call_operand.vmem [shape: bf16[32,16], index: 1, kind: input, shape index: {}]
  %s2 = inlined_call_operand.vmem [shape: f32[1,16], index: 2, kind: input, shape index: {}]
  %s3 = inlined_call_operand.vmem [shape: f32[1,16], index: 3, kind: input, shape index: {}]
  %s4 = inlined_call_operand.vmem [shape: f32[64,16], index: 4, kind: output, shape index: {}]
  %s5 = sld [smem:[#allocation0]]
  $region49: #{tpu_custom_call.1} parent=0
    _
  %s7 = ssub.s32 1, %s5
  %s8 = scalar_select 0, %s7, %s5
  loop: start=0, step=1, limit=4
  $region2: #{tpu_custom_call.1} parent=0 // loop_pre_header
    _
  $region3: #{tpu_custom_call.1} parent=0 // loop_header
    %s10 = sphi 0, %s14
    %p11 = scmp.ge.s32.totalorder %s10, 4
    %s20 = sphi 0, %s22
    %s23 = sphi 0, %s20
    %s24 = sphi 0, %s23
    %s40 = sphi 0, %s24
    %s44 = sphi 0, %s44
    %s46 = sphi 0, %s44
    %s47 = sphi 0, %s46
    %s61 = sphi 0, %s47
    %s65 = sphi 0, %s65
    %s67 = sphi 0, %s65
    %s68 = sphi 0, %s67
    %s82 = sphi 0, %s68
    %s86 = sphi 0, %s86
    %s88 = sphi 0, %s86
    %s89 = sphi 0, %s88
    %s103 = sphi 0, %s89
    %s109 = sphi 0, %s111
    %s112 = sphi 0, %s109
    %s113 = sphi 0, %s112
    %s129 = sphi 0, %s113
  $region4: #{tpu_custom_call.1} parent=0 // loop_header_branch
    %13 = sbr.rel (%p11) target = $region8
  $region5: #{tpu_custom_call.1} parent=0 // loop_body
    %s15 = ssub.s32 %s10, 1
    %s16 = ssub.s32 %s10, 2
    %s17 = sadd.s32 %s10, 1
    %s18 = ssub.s32 %s10, %s17
    %p19 = scmp.eq.s32.totalorder %s18, 0
    %s21 = sadd.s32 %s20, 1
    %s22 = scalar_select %p19, %s20, %s21
    %p25 = pneg %p19
    %p26 = scmp.eq.s32.totalorder %s10, 1
    %p27 = por %p25, %p26
    %p28 = scmp.ne.s32.totalorder %s20, %s23
    %p29 = scmp.eq.s32.totalorder %s10, 0
    %p30 = por %p28, %p29
    %p31 = scmp.ne.s32.totalorder %s20, %s23
    %p32 = scmp.eq.s32.totalorder %s15, 1
    %p33 = por %p31, %p32
    %p34 = scmp.ne.s32.totalorder %s23, %s24
    %p35 = scmp.eq.s32.totalorder %s15, 0
    %p36 = por %p34, %p35
    %p37 = scmp.ne.s32.totalorder %s23, %s24
    %p38 = scmp.eq.s32.totalorder %s16, 1
    %p39 = por %p37, %p38
    %p41 = scmp.ne.s32.totalorder %s24, %s40
    %p42 = scmp.eq.s32.totalorder %s16, 0
    %p43 = por %p41, %p42
    %s45 = sadd.s32 %s44, 1
    %p48 = scmp.eq.s32.totalorder %s10, 1
    %p49 = scmp.ne.s32.totalorder %s44, %s46
    %p50 = scmp.eq.s32.totalorder %s10, 0
    %p51 = por %p49, %p50
    %p52 = scmp.ne.s32.totalorder %s44, %s46
    %p53 = scmp.eq.s32.totalorder %s15, 1
    %p54 = por %p52, %p53
    %p55 = scmp.ne.s32.totalorder %s46, %s47
    %p56 = scmp.eq.s32.totalorder %s15, 0
    %p57 = por %p55, %p56
    %p58 = scmp.ne.s32.totalorder %s46, %s47
    %p59 = scmp.eq.s32.totalorder %s16, 1
    %p60 = por %p58, %p59
    %p62 = scmp.ne.s32.totalorder %s47, %s61
    %p63 = scmp.eq.s32.totalorder %s16, 0
    %p64 = por %p62, %p63
    %s66 = sadd.s32 %s65, 1
    %p69 = scmp.eq.s32.totalorder %s10, 1
    %p70 = scmp.ne.s32.totalorder %s65, %s67
    %p71 = scmp.eq.s32.totalorder %s10, 0
    %p72 = por %p70, %p71
    %p73 = scmp.ne.s32.totalorder %s65, %s67
    %p74 = scmp.eq.s32.totalorder %s15, 1
    %p75 = por %p73, %p74
    %p76 = scmp.ne.s32.totalorder %s67, %s68
    %p77 = scmp.eq.s32.totalorder %s15, 0
    %p78 = por %p76, %p77
    %p79 = scmp.ne.s32.totalorder %s67, %s68
    %p80 = scmp.eq.s32.totalorder %s16, 1
    %p81 = por %p79, %p80
    %p83 = scmp.ne.s32.totalorder %s68, %s82
    %p84 = scmp.eq.s32.totalorder %s16, 0
    %p85 = por %p83, %p84
    %s87 = sadd.s32 %s86, 1
    %p90 = scmp.eq.s32.totalorder %s10, 1
    %p91 = scmp.ne.s32.totalorder %s86, %s88
    %p92 = scmp.eq.s32.totalorder %s10, 0
    %p93 = por %p91, %p92
    %p94 = scmp.ne.s32.totalorder %s86, %s88
    %p95 = scmp.eq.s32.totalorder %s15, 1
    %p96 = por %p94, %p95
    %p97 = scmp.ne.s32.totalorder %s88, %s89
    %p98 = scmp.eq.s32.totalorder %s15, 0
    %p99 = por %p97, %p98
    %p100 = scmp.ne.s32.totalorder %s88, %s89
    %p101 = scmp.eq.s32.totalorder %s16, 1
    %p102 = por %p100, %p101
    %p104 = scmp.ne.s32.totalorder %s89, %s103
    %p105 = scmp.eq.s32.totalorder %s16, 0
    %p106 = por %p104, %p105
    %s107 = ssub.s32 %s10, %s17
    %p108 = scmp.eq.s32.totalorder %s107, 0
    %s110 = sadd.s32 %s109, 1
    %s111 = scalar_select %p108, %s109, %s110
    %p114 = pneg %p108
    %p115 = scmp.eq.s32.totalorder %s10, 1
    %p116 = por %p114, %p115
    %p117 = scmp.ne.s32.totalorder %s109, %s112
    %p118 = scmp.eq.s32.totalorder %s10, 0
    %p119 = por %p117, %p118
    %p120 = scmp.ne.s32.totalorder %s109, %s112
    %p121 = scmp.eq.s32.totalorder %s15, 1
    %p122 = por %p120, %p121
    %p123 = scmp.ne.s32.totalorder %s112, %s113
    %p124 = scmp.eq.s32.totalorder %s15, 0
    %p125 = por %p123, %p124
    %p126 = scmp.ne.s32.totalorder %s112, %s113
    %p127 = scmp.eq.s32.totalorder %s16, 1
    %p128 = por %p126, %p127
    %p130 = scmp.ne.s32.totalorder %s113, %s129
    %p131 = scmp.eq.s32.totalorder %s16, 0
    %p132 = por %p130, %p131
    %p133 = scmp.le.s32.totalorder 1, %s10
    %p134 = scmp.lt.s32.totalorder %s10, 3
    %p135 = pnand %p133, %p134
    %p136 = pneg %p135
    // Predicated region
    $region9: #{tpu_custom_call.1} parent=5 // pred_check
      _
    $region10: #{tpu_custom_call.1} parent=5 // pred_check_branch
      %138 = sbr.rel (%p135) target = $region12
    $region11: #{tpu_custom_call.1} parent=5 // pred_region
      %s139 = ssub.s32 %s10, 1
      // Predicated region
      $region13: #{tpu_custom_call.1} parent=11 // pred_check
        %p140 = pneg %p57
      $region14: #{tpu_custom_call.1} parent=11 // pred_check_branch
        %142 = sbr.rel (%p140) target = $region16
      $region15: #{tpu_custom_call.1} parent=11 // pred_region
        _
      $region16: #{tpu_custom_call.1} parent=11 // pred_fallthru
        _
      // Predicated region
      $region17: #{tpu_custom_call.1} parent=11 // pred_check
        %p143 = pneg %p78
      $region18: #{tpu_custom_call.1} parent=11 // pred_check_branch
        %145 = sbr.rel (%p143) target = $region20
      $region19: #{tpu_custom_call.1} parent=11 // pred_region
        _
      $region20: #{tpu_custom_call.1} parent=11 // pred_fallthru
        _
      // Predicated region
      $region21: #{tpu_custom_call.1} parent=11 // pred_check
        %p146 = pneg %p99
      $region22: #{tpu_custom_call.1} parent=11 // pred_check_branch
        %148 = sbr.rel (%p146) target = $region24
      $region23: #{tpu_custom_call.1} parent=11 // pred_region
        _
      $region24: #{tpu_custom_call.1} parent=11 // pred_fallthru
        _
    $region12: #{tpu_custom_call.1} parent=5 // pred_fallthru
      _
    %p149 = scmp.lt.s32.totalorder %s10, 2
    // Predicated region
    $region25: #{tpu_custom_call.1} parent=5 // pred_check
      %p150 = pneg %p149
    $region26: #{tpu_custom_call.1} parent=5 // pred_check_branch
      %152 = sbr.rel (%p150) target = $region28
    $region27: #{tpu_custom_call.1} parent=5 // pred_region
      // Predicated region
      $region29: #{tpu_custom_call.1} parent=27 // pred_check
        %p153 = pneg %p30
      $region30: #{tpu_custom_call.1} parent=27 // pred_check_branch
        %155 = sbr.rel (%p153) target = $region32
      $region31: #{tpu_custom_call.1} parent=27 // pred_region
        %s156 = smul.u32 4, %s10
        %p157 = scmp.lt.s32.totalorder %s156, 7
        %s158 = scalar_select %p157, %s156, 7
        %s159 = smul.addr %s158, 4
        %s160 = scalar_lea.vmem %s0, %s159
        %s161 = smul.u32 4, %s10
      $region32: #{tpu_custom_call.1} parent=27 // pred_fallthru
        _
    $region28: #{tpu_custom_call.1} parent=5 // pred_fallthru
      _
    %p162 = scmp.le.s32.totalorder 1, %s10
    %p163 = scmp.lt.s32.totalorder %s10, 3
    %p164 = pnand %p162, %p163
    %p165 = pneg %p164
    // Predicated region
    $region33: #{tpu_custom_call.1} parent=5 // pred_check
      _
    $region34: #{tpu_custom_call.1} parent=5 // pred_check_branch
      %167 = sbr.rel (%p164) target = $region36
    $region35: #{tpu_custom_call.1} parent=5 // pred_region
      %s168 = ssub.s32 %s10, 1
      %s169 = smul.u32 4, %s15
      %p170 = scmp.lt.s32.totalorder %s169, 7
      %s171 = scalar_select %p170, %s169, 7
      %s172 = smul.addr %s171, 4
      %s173 = scalar_lea.vmem %s0, %s172
      %p174 = pneg %p36
      %p175 = pneg %p33
      %p176 = pneg %p57
      %p177 = pneg %p54
      %p178 = pneg %p78
      %p179 = pneg %p75
      %p180 = pneg %p99
      %p181 = pneg %p96
      %p182 = pneg %p125
      %p183 = pneg %p122
      %s184 = smul.u32 4, %s15
      %p185 = scmp.lt.s32.totalorder %s184, 7
      %s186 = scalar_select %p185, %s184, 7
      %s187 = smul.addr %s186, 8
      %s188 = scalar_lea.vmem %s4, %s187
      %s189 = smul.u32 4, %s15
      %p190 = scmp.lt.s32.totalorder %s189, 7
      %s191 = scalar_select %p190, %s189, 7
      %s192 = smul.addr %s191, 4
      %s193 = scalar_lea.vmem %s0, %s192
      %s194 = smul.u32 4, %s15
      %s195 = smul.u32 4, %s15
      %p196 = scmp.lt.s32.totalorder %s195, 7
      %s197 = scalar_select %p196, %s195, 7
      %s198 = smul.addr %s197, 8
      %s199 = scalar_lea.vmem %s4, %s198
      %s200 = smul.u32 4, %s15
      %v202 = vld [vmem:[%s193] sm:$0xf]
      %v203 = vld [vmem:[%s193 + $0x4] sm:$0xf]
      %v204 = vld [vmem:[%s193 + $0x8] sm:$0xf]
      %v205 = vld [vmem:[%s193 + $0xc] sm:$0xf]
      %v206 = vld [vmem:[%s1] sm:$0xf]
      %v207 = vld [vmem:[%s1 + $0x4] sm:$0xf]
      %v208 = vld [vmem:[%s1 + $0x8] sm:$0xf]
      %v209 = vld [vmem:[%s1 + $0xc] sm:$0xf]
      %v210 = vld [vmem:[%s2] sm:$0x1]
      %v211 = vld [vmem:[%s3] sm:$0x1]
      %v216 = vunpack.c.l.b16 %v202
      %v217 = vunpack.c.l.b16 %v203
      %v218 = vunpack.c.l.b16 %v204
      %v219 = vunpack.c.l.b16 %v205
      %v220 = vpack.c.b16 %v217, %v216
      %v221 = vpack.c.b16 %v219, %v218
      %v226 = vunpack.c.l.b16 %v206
      %v227 = vunpack.c.l.b16 %v207
      %v228 = vunpack.c.l.b16 %v208
      %v229 = vunpack.c.l.b16 %v209
      %v230 = vpack.c.b16 %v227, %v226
      %v231 = vpack.c.b16 %v229, %v228
      %vm234 = vcmask 261120
      %v236 = vsel %vm234, %v220, 0
      %v239 = vsel %vm234, %v221, 0
      %241 = vmatpush.bf16.msra.mxu0 0
      %242 = vmatpush.bf16.msra.mxu0 0
      %243 = vmatpush.bf16.msra.mxu0 0
      %244 = vmatpush.bf16.msra.mxu0 0
      %245 = vmatpush.bf16.msra.mxu0 0
      %246 = vmatpush.bf16.msra.mxu0 0
      %247 = vmatpush.bf16.msra.mxu0 %v231
      %248 = vmatpush.bf16.msra.mxu0 %v230
      %249 = vmatmul.bf16.gmra.mxu0 %v236
      %v250 = vpop.f32.mrf.mxu0
      %v251 = vadd.f32 0.0, %v250
      %v252 = vpop.f32.mrf.mxu0
      %v253 = vadd.f32 0.0, %v252
      %254 = vmatmul.bf16.gmra.mxu0 %v239
      %v255 = vpop.f32.mrf.mxu0
      %v256 = vadd.f32 0.0, %v255
      %v257 = vpop.f32.mrf.mxu0
      %v258 = vadd.f32 0.0, %v257
      %259 = vdwg.mxu0
      %v260 = vunpack.c.l.bf16 %v202
      %v261 = vunpack.c.l.bf16 %v203
      %v262 = vunpack.c.l.bf16 %v204
      %v263 = vunpack.c.l.bf16 %v205
      %v264 = vmul.f32 %v260, %v260
      %v265 = vmul.f32 %v261, %v261
      %v266 = vmul.f32 %v262, %v262
      %v267 = vmul.f32 %v263, %v263
      %v268 = vsel %vm234, %v264, 0.0
      %269 = vadd.xlane.f32.xlu0 %v268
      %v270 = vpop.xlane.xlu0 %269
      %v271 = vsel %vm234, %v265, 0.0
      %272 = vadd.xlane.f32.xlu0 %v271
      %v273 = vpop.xlane.xlu0 %272
      %v274 = vsel %vm234, %v266, 0.0
      %275 = vadd.xlane.f32.xlu0 %v274
      %v276 = vpop.xlane.xlu0 %275
      %v277 = vsel %vm234, %v267, 0.0
      %278 = vadd.xlane.f32.xlu0 %v277
      %v279 = vpop.xlane.xlu0 %278
      %v280 = vmul.f32 %v251, 2.0
      %v281 = vmul.f32 %v253, 2.0
      %v282 = vmul.f32 %v256, 2.0
      %v283 = vmul.f32 %v258, 2.0
      %v284 = vsub.f32 %v270, %v280
      %v285 = vsub.f32 %v273, %v281
      %v286 = vsub.f32 %v276, %v282
      %v287 = vsub.f32 %v279, %v283
      %v289 = vperm.slane %v210, 0
      %v291 = vadd.f32 %v284, %v289
      %v292 = vadd.f32 %v285, %v289
      %v293 = vadd.f32 %v286, %v289
      %v294 = vadd.f32 %v287, %v289
      %v296 = vperm.slane %v211, 0
      %v298 = vmul.f32 %v291, %v296
      %v299 = vmul.f32 %v292, %v296
      %v300 = vmul.f32 %v293, %v296
      %v301 = vmul.f32 %v294, %v296
      %vm302 = vcmask 130048
      %v303 = vsel %vm302, %v298, -inf
      %304 = vmax.xlane.f32.xlu0 %v303
      %v305 = vpop.xlane.xlu0 %304
      %v306 = vsel %vm302, %v299, -inf
      %307 = vmax.xlane.f32.xlu0 %v306
      %v308 = vpop.xlane.xlu0 %307
      %v309 = vsel %vm302, %v300, -inf
      %310 = vmax.xlane.f32.xlu0 %v309
      %v311 = vpop.xlane.xlu0 %310
      %v312 = vsel %vm302, %v301, -inf
      %313 = vmax.xlane.f32.xlu0 %v312
      %v314 = vpop.xlane.xlu0 %313
      %v315 = vsub.f32 %v298, %v305
      %v316 = vsub.f32 %v299, %v308
      %v317 = vsub.f32 %v300, %v311
      %v318 = vsub.f32 %v301, %v314
      %v319 = vmul.f32 %v315, 1.442695
      %v320 = vpow.pop %v319
      %v321 = vmul.f32 %v316, 1.442695
      %v322 = vpow.pop %v321
      %v323 = vmul.f32 %v317, 1.442695
      %v324 = vpow.pop %v323
      %v325 = vmul.f32 %v318, 1.442695
      %v326 = vpow.pop %v325
      %v327 = vsel %vm302, %v320, 0.0
      %328 = vadd.xlane.f32.xlu0 %v327
      %v329 = vpop.xlane.xlu0 %328
      %v330 = vsel %vm302, %v322, 0.0
      %331 = vadd.xlane.f32.xlu0 %v330
      %v332 = vpop.xlane.xlu0 %331
      %v333 = vsel %vm302, %v324, 0.0
      %334 = vadd.xlane.f32.xlu0 %v333
      %v335 = vpop.xlane.xlu0 %334
      %v336 = vsel %vm302, %v326, 0.0
      %337 = vadd.xlane.f32.xlu0 %v336
      %v338 = vpop.xlane.xlu0 %337
      %v339 = vrcp.pop %v329
      %v340 = vrcp.pop %v332
      %v341 = vrcp.pop %v335
      %v342 = vrcp.pop %v338
      %v343 = vmul.f32 %v320, %v339
      %v344 = vmul.f32 %v322, %v340
      %v345 = vmul.f32 %v324, %v341
      %v346 = vmul.f32 %v326, %v342
      %347 = vst.msk [vmem:[%s199] sm:$0xff] %vm302, %v343
      %348 = vst.msk [vmem:[%s199 + $0x8] sm:$0xff] %vm302, %v344
      %349 = vst.msk [vmem:[%s199 + $0x10] sm:$0xff] %vm302, %v345
      %350 = vst.msk [vmem:[%s199 + $0x18] sm:$0xff] %vm302, %v346
      %s351 = smul.u32 4, %s15
      %p352 = scmp.lt.s32.totalorder %s351, 7
      %s353 = scalar_select %p352, %s351, 7
      %s354 = smul.addr %s353, 8
      %s355 = scalar_lea.vmem %s4, %s354
      // Predicated region
      $region37: #{tpu_custom_call.1} parent=35 // pred_check
        %p356 = pneg %p122
      $region38: #{tpu_custom_call.1} parent=35 // pred_check_branch
        %358 = sbr.rel (%p356) target = $region40
      $region39: #{tpu_custom_call.1} parent=35 // pred_region
        %s359 = smul.u32 4, %s15
      $region40: #{tpu_custom_call.1} parent=35 // pred_fallthru
        _
    $region36: #{tpu_custom_call.1} parent=5 // pred_fallthru
      _
    %p360 = scmp.le.s32.totalorder 2, %s10
    // Predicated region
    $region41: #{tpu_custom_call.1} parent=5 // pred_check
      %p361 = pneg %p360
    $region42: #{tpu_custom_call.1} parent=5 // pred_check_branch
      %363 = sbr.rel (%p361) target = $region44
    $region43: #{tpu_custom_call.1} parent=5 // pred_region
      %s364 = ssub.s32 %s10, 2
      // Predicated region
      $region45: #{tpu_custom_call.1} parent=43 // pred_check
        %p365 = pneg %p128
      $region46: #{tpu_custom_call.1} parent=43 // pred_check_branch
        %367 = sbr.rel (%p365) target = $region48
      $region47: #{tpu_custom_call.1} parent=43 // pred_region
        %s368 = smul.u32 4, %s16
        %p369 = scmp.lt.s32.totalorder %s368, 7
        %s370 = scalar_select %p369, %s368, 7
        %s371 = smul.addr %s370, 8
        %s372 = scalar_lea.vmem %s4, %s371
      $region48: #{tpu_custom_call.1} parent=43 // pred_fallthru
        _
    $region44: #{tpu_custom_call.1} parent=5 // pred_fallthru
      _
  $region6: #{tpu_custom_call.1} parent=0 // loop_footer
    %s14 = sadd.s32 1, %s10
  $region7: #{tpu_custom_call.1} parent=0 // loop_footer_branch
    %9 = sbr.rel target = $region3
  $region8: #{tpu_custom_call.1} parent=0 // loop_exit
    _

</llo_original>
